<compile_context>
chip_gen: v7x
topology: tpu7x:2x2x1
jax: 0.10.0
libtpu: 0.0.40
codegen_flags: <defaults>
</compile_context>

<pallas_src>
import functools

import jax
import jax.numpy as jnp
from jax import lax
from jax.experimental import pallas as pl
from jax.experimental.pallas import tpu as pltpu

LANES = 128
GROUP_ROWS = 8            # one (8, 128) vreg of pixels per loop iteration
EPS = 1e-10


def _rows_per_tile():
    """Rows (of 128 px) per grid step: 512 KiB/plane on v5e, 1 MiB elsewhere."""
    try:
        kind = jax.devices()[0].device_kind.lower()
    except Exception:
        kind = ""
    if "v5 lite" in kind or "v5e" in kind or "v5lite" in kind:
        return 1024       # 512 KiB per channel plane (v5e 16 MiB scoped default)
    return 2048           # 1 MiB per channel plane (v6e / v7x)


def _hue(r, g, b):
    """Hue channel of rgb2hsv with torch.min(dim=1) first-index tie-breaking.

    argmin==0 (r is min) -> 60*(b-g)/max_min + 180
    argmin==1 (g is min) -> 60*(r-b)/max_min + 300
    argmin==2 (b is min) -> 60*(g-r)/max_min + 60
    """
    max_rgb = jnp.maximum(jnp.maximum(r, g), b)
    min_rgb = jnp.minimum(jnp.minimum(r, g), b)
    max_min = max_rgb - min_rgb + EPS
    r_is_min = (r <= g) & (r <= b)
    g_is_min = g <= b
    num = jnp.where(r_is_min, b - g, jnp.where(g_is_min, r - b, g - r))
    off = jnp.where(r_is_min, 180.0, jnp.where(g_is_min, 300.0, 60.0))
    return 60.0 * num / max_min + off      # exact divide (keeps rtol=1e-5)


def _hue_loss_kernel(x1_ref, x2_ref, o_ref, *, n_rows, row_tile, ragged):
    # x*_ref: (3, row_tile, 128) channel-major pixel tile for this grid step.
    # o_ref : resident (8, 128) accumulator for this batch element (grid axis
    #         1 is the reduction axis).
    i = pl.program_id(1)

    @pl.when(i == 0)
    def _():
        o_ref[...] = jnp.zeros_like(o_ref)

    if ragged:
        valid_rows = n_rows - i * row_tile    # rows of this tile that are real

    def rows_contrib(row0, nrows):
        sl = pl.ds(row0, nrows)
        r1 = x1_ref[0, sl, :].astype(jnp.float32)
        g1 = x1_ref[1, sl, :].astype(jnp.float32)
        b1 = x1_ref[2, sl, :].astype(jnp.float32)
        r2 = x2_ref[0, sl, :].astype(jnp.float32)
        g2 = x2_ref[1, sl, :].astype(jnp.float32)
        b2 = x2_ref[2, sl, :].astype(jnp.float32)
        d = 180.0 - jnp.abs(180.0 - jnp.abs(_hue(r1, g1, b1) - _hue(r2, g2, b2)))
        if ragged:
            rows = row0 + lax.broadcasted_iota(jnp.int32, (nrows, LANES), 0)
            d = jnp.where(rows < valid_rows, d, 0.0)   # select, NaN-safe
        return d

    groups = row_tile // GROUP_ROWS           # full (8,128) groups (static)
    rem = row_tile - groups * GROUP_ROWS      # leftover rows (< 8, static)

    if groups > 0:
        def body(j, acc):
            row0 = pl.multiple_of(j * GROUP_ROWS, GROUP_ROWS)
            return acc + rows_contrib(row0, GROUP_ROWS)

        acc = lax.fori_loop(0, groups, body,
                            jnp.zeros((GROUP_ROWS, LANES), jnp.float32),
                            unroll=min(groups, 8))
        o_ref[...] += acc

    if rem > 0:
        # Only happens when row_tile == n_rows (single, never-ragged tile).
        o_ref[0:rem, :] += rows_contrib(groups * GROUP_ROWS, rem)


@jax.jit
def hue_loss(img1, img2):
    """HueLoss.forward: mean(180 - |180 - |hue(img1) - hue(img2)||) / 360."""
    assert img1.shape == img2.shape and img1.shape[1] == 3
    B, C, H, W = img1.shape
    n_pix = H * W

    x1 = img1.reshape(B, C, n_pix)
    x2 = img2.reshape(B, C, n_pix)

    # Rare fallback only when H*W is not lane-aligned: zero-pad BOTH images to
    # the next multiple of 128.  Identical zero padding => hue1 == hue2 == 180
    # on the pad => contributes exactly 0 to the sum.  Real image sizes are
    # almost always 128-aligned, so the common path does NO wrapper-side copy.
    if n_pix % LANES != 0:
        pad = LANES - n_pix % LANES
        x1 = jnp.pad(x1, ((0, 0), (0, 0), (0, pad)))
        x2 = jnp.pad(x2, ((0, 0), (0, 0), (0, pad)))
    n_rows = x1.shape[-1] // LANES

    # Free (bitcast) reshape to lane-dense (row, 128) pixel planes.
    x1 = x1.reshape(B, C, n_rows, LANES)
    x2 = x2.reshape(B, C, n_rows, LANES)

    # Balanced row tiles: waste bounded by < 1 partial tile; the partial last
    # tile (if any) is masked in-kernel instead of padded in HBM.
    max_rows = _rows_per_tile()
    n_tiles = -(-n_rows // max_rows)                      # cdiv
    row_tile = -(-n_rows // n_tiles)                      # cdiv (balanced)
    row_tile = min(n_rows,
                   ((row_tile + GROUP_ROWS - 1) // GROUP_ROWS) * GROUP_ROWS)
    n_row_tiles = -(-n_rows // row_tile)
    ragged = (n_rows % row_tile) != 0

    kernel = functools.partial(_hue_loss_kernel, n_rows=n_rows,
                               row_tile=row_tile, ragged=ragged)

    # Each image is passed once; channels are sliced in-kernel with free static
    # ref views -> 2 (3-segment strided) DMAs per grid step instead of 6.
    in_spec = pl.BlockSpec((None, C, row_tile, LANES), lambda b, i: (b, 0, i, 0))

    partial_sums = pl.pallas_call(
        kernel,
        out_shape=jax.ShapeDtypeStruct((B, GROUP_ROWS, LANES), jnp.float32),
        grid_spec=pltpu.PrefetchScalarGridSpec(
            num_scalar_prefetch=0,
            grid=(B, n_row_tiles),
            in_specs=[in_spec, in_spec],
            out_specs=pl.BlockSpec((None, GROUP_ROWS, LANES),
                                   lambda b, i: (b, 0, 0)),
        ),
        compiler_params=pltpu.CompilerParams(
            dimension_semantics=("parallel", "arbitrary"),
            vmem_limit_bytes=32 * 1024 * 1024,
        ),
    )(x1, x2)

    # TODO(synk): on v7x with B == 1, add a second "parallel" grid axis that
    # splits the row range (NSPLIT=2) so both TensorCores are used.
    # TODO(synk): if callers hold uint8/bf16 images, keep them narrow through
    # HBM with dtype-native (32,128)/(16,128) sublane packing instead of f32.

    # Tiny epilogue: one cross-lane reduce, then mean and /360.
    return jnp.sum(partial_sums) / (B * n_pix) / 360.0


def _hue_loss_ref(img1, img2, eps=1e-10):
    """Pure-JAX reference mirroring the PyTorch code (correctness check)."""
    def hue(img):
        r, g, b = img[:, 0], img[:, 1], img[:, 2]
        max_rgb = jnp.maximum(jnp.maximum(r, g), b)
        min_rgb = jnp.minimum(jnp.minimum(r, g), b)
        max_min = max_rgb - min_rgb + eps
        h1 = 60.0 * (g - r) / max_min + 60.0
        h2 = 60.0 * (b - g) / max_min + 180.0
        h3 = 60.0 * (r - b) / max_min + 300.0
        r_is_min = (r <= g) & (r <= b)
        g_is_min = g <= b
        return jnp.where(r_is_min, h2, jnp.where(g_is_min, h3, h1))
    h1 = hue(img1.astype(jnp.float32))
    h2 = hue(img2.astype(jnp.float32))
    d = 180.0 - jnp.abs(180.0 - jnp.abs(h1 - h2))
    return jnp.mean(d) / 360.0


if __name__ == "__main__":
    key = jax.random.PRNGKey(0)
    k1, k2 = jax.random.split(key)

    # Shape implied by the module spec: (B, 3, H, W).
    B, C, H, W = 2, 3, 16, 16
    img1 = jax.random.uniform(k1, (B, C, H, W), dtype=jnp.float32)
    img2 = jax.random.uniform(k2, (B, C, H, W), dtype=jnp.float32)
    # Exercise torch.min(dim=1) first-index tie-breaking (grayscale / 2-way ties).
    img1 = img1.at[:, :, 0, 0].set(0.25)      # r == g == b
    img2 = img2.at[:, 1:, 0, 1].set(0.75)     # g == b

    out = jax.block_until_ready(hue_loss(img1, img2))
    ref = jax.block_until_ready(_hue_loss_ref(img1, img2))
    assert jnp.allclose(out, ref, rtol=1e-5, atol=1e-5), (out, ref)

    # Second shape exercises the fori_loop + remainder-rows path (n_rows = 10).
    B2, H2, W2 = 1, 40, 32
    j1 = jax.random.uniform(k2, (B2, C, H2, W2), dtype=jnp.float32)
    j2 = jax.random.uniform(k1, (B2, C, H2, W2), dtype=jnp.float32)
    out2 = jax.block_until_ready(hue_loss(j1, j2))
    ref2 = jax.block_until_ready(_hue_loss_ref(j1, j2))
    assert jnp.allclose(out2, ref2, rtol=1e-5, atol=1e-5), (out2, ref2)

    print("KERNEL_OK")
</pallas_src>

<mosaic_0001>
module attributes {stable_mosaic.version = 11 : i64} {
  func.func @_hue_loss_kernel(%arg0: i32, %arg1: i32, %arg2: memref<1x3x2x128xf32, #tpu.memory_space<vmem>>, %arg3: memref<1x3x2x128xf32, #tpu.memory_space<vmem>>, %arg4: memref<1x8x128xf32, #tpu.memory_space<vmem>>) attributes {dimension_semantics = [#tpu.dimension_semantics<parallel>, #tpu.dimension_semantics<arbitrary>], iteration_bounds = array<i64: 2, 1>, scalar_prefetch = 0 : i64, scratch_operands = 0 : i64, tpu.core_type = #tpu.core_type<tc>, window_params = [{transform_indices = @transform_0, window_bounds = array<i64: 1, 3, 2, 128>}, {transform_indices = @transform_1, window_bounds = array<i64: 1, 3, 2, 128>}, {transform_indices = @transform_2, window_bounds = array<i64: 1, 8, 128>}]} {
    %c0_i32 = arith.constant 0 : i32
    %0 = arith.cmpi eq, %arg1, %c0_i32 : i32
    %1 = arith.extui %0 : i1 to i32
    %c0_i32_0 = arith.constant 0 : i32
    %2 = arith.cmpi ne, %1, %c0_i32_0 : i32
    scf.if %2 {
      %cst_39 = arith.constant 0.000000e+00 : f32
      %78 = vector.broadcast %cst_39 : f32 to vector<8x128xf32>
      %c0_40 = arith.constant 0 : index
      %c0_41 = arith.constant 0 : index
      %c0_42 = arith.constant 0 : index
      %79 = vector.load %arg4[%c0_40, %c0_41, %c0_42] : memref<1x8x128xf32, #tpu.memory_space<vmem>>, vector<1x8x128xf32>
      %80 = vector.shape_cast %79 : vector<1x8x128xf32> to vector<8x128xf32>
      %81 = vector.shape_cast %78 : vector<8x128xf32> to vector<1x8x128xf32>
      tpu.vector_store %arg4[%c0_40, %c0_41, %c0_42], %81 {strides = array<i32>} : memref<1x8x128xf32, #tpu.memory_space<vmem>>, vector<1x8x128xf32>,
    } else {
    }
    %c0 = arith.constant 0 : index
    %c0_1 = arith.constant 0 : index
    %c0_2 = arith.constant 0 : index
    %3 = vector.load %arg4[%c0, %c0_1, %c0_2] : memref<1x8x128xf32, #tpu.memory_space<vmem>>, vector<1x2x128xf32>
    %4 = vector.shape_cast %3 : vector<1x2x128xf32> to vector<2x128xf32>
    %c0_3 = arith.constant 0 : index
    %c0_4 = arith.constant 0 : index
    %c0_5 = arith.constant 0 : index
    %c0_6 = arith.constant 0 : index
    %5 = vector.load %arg2[%c0_3, %c0_4, %c0_5, %c0_6] : memref<1x3x2x128xf32, #tpu.memory_space<vmem>>, vector<1x1x2x128xf32>
    %6 = vector.shape_cast %5 : vector<1x1x2x128xf32> to vector<2x128xf32>
    %c0_7 = arith.constant 0 : index
    %c1 = arith.constant 1 : index
    %c0_8 = arith.constant 0 : index
    %c0_9 = arith.constant 0 : index
    %7 = vector.load %arg2[%c0_7, %c1, %c0_8, %c0_9] : memref<1x3x2x128xf32, #tpu.memory_space<vmem>>, vector<1x1x2x128xf32>
    %8 = vector.shape_cast %7 : vector<1x1x2x128xf32> to vector<2x128xf32>
    %c0_10 = arith.constant 0 : index
    %c2 = arith.constant 2 : index
    %c0_11 = arith.constant 0 : index
    %c0_12 = arith.constant 0 : index
    %9 = vector.load %arg2[%c0_10, %c2, %c0_11, %c0_12] : memref<1x3x2x128xf32, #tpu.memory_space<vmem>>, vector<1x1x2x128xf32>
    %10 = vector.shape_cast %9 : vector<1x1x2x128xf32> to vector<2x128xf32>
    %c0_13 = arith.constant 0 : index
    %c0_14 = arith.constant 0 : index
    %c0_15 = arith.constant 0 : index
    %c0_16 = arith.constant 0 : index
    %11 = vector.load %arg3[%c0_13, %c0_14, %c0_15, %c0_16] : memref<1x3x2x128xf32, #tpu.memory_space<vmem>>, vector<1x1x2x128xf32>
    %12 = vector.shape_cast %11 : vector<1x1x2x128xf32> to vector<2x128xf32>
    %c0_17 = arith.constant 0 : index
    %c1_18 = arith.constant 1 : index
    %c0_19 = arith.constant 0 : index
    %c0_20 = arith.constant 0 : index
    %13 = vector.load %arg3[%c0_17, %c1_18, %c0_19, %c0_20] : memref<1x3x2x128xf32, #tpu.memory_space<vmem>>, vector<1x1x2x128xf32>
    %14 = vector.shape_cast %13 : vector<1x1x2x128xf32> to vector<2x128xf32>
    %c0_21 = arith.constant 0 : index
    %c2_22 = arith.constant 2 : index
    %c0_23 = arith.constant 0 : index
    %c0_24 = arith.constant 0 : index
    %15 = vector.load %arg3[%c0_21, %c2_22, %c0_23, %c0_24] : memref<1x3x2x128xf32, #tpu.memory_space<vmem>>, vector<1x1x2x128xf32>
    %16 = vector.shape_cast %15 : vector<1x1x2x128xf32> to vector<2x128xf32>
    %17 = arith.maximumf %6, %8 : vector<2x128xf32>
    %18 = arith.maximumf %17, %10 : vector<2x128xf32>
    %19 = arith.minimumf %6, %8 : vector<2x128xf32>
    %20 = arith.minimumf %19, %10 : vector<2x128xf32>
    %21 = arith.subf %18, %20 : vector<2x128xf32>
    %cst = arith.constant 1.000000e-10 : f32
    %22 = vector.broadcast %cst : f32 to vector<2x128xf32>
    %23 = arith.addf %21, %22 : vector<2x128xf32>
    %24 = arith.cmpf ole, %6, %8 : vector<2x128xf32>
    %25 = arith.cmpf ole, %6, %10 : vector<2x128xf32>
    %26 = arith.andi %24, %25 : vector<2x128xi1>
    %27 = arith.cmpf ole, %8, %10 : vector<2x128xf32>
    %28 = arith.subf %10, %8 : vector<2x128xf32>
    %29 = arith.subf %6, %10 : vector<2x128xf32>
    %30 = arith.subf %8, %6 : vector<2x128xf32>
    %31 = arith.select %27, %29, %30 : vector<2x128xi1>, vector<2x128xf32>
    %32 = arith.select %26, %28, %31 : vector<2x128xi1>, vector<2x128xf32>
    %cst_25 = arith.constant 3.000000e+02 : f32
    %cst_26 = arith.constant 6.000000e+01 : f32
    %33 = vector.broadcast %cst_25 : f32 to vector<2x128xf32>
    %34 = vector.broadcast %cst_26 : f32 to vector<2x128xf32>
    %35 = arith.select %27, %33, %34 : vector<2x128xi1>, vector<2x128xf32>
    %cst_27 = arith.constant 1.800000e+02 : f32
    %36 = vector.broadcast %cst_27 : f32 to vector<2x128xf32>
    %37 = arith.select %26, %36, %35 : vector<2x128xi1>, vector<2x128xf32>
    %cst_28 = arith.constant 6.000000e+01 : f32
    %38 = vector.broadcast %cst_28 : f32 to vector<2x128xf32>
    %39 = arith.mulf %38, %32 : vector<2x128xf32>
    %40 = arith.divf %39, %23 : vector<2x128xf32>
    %41 = arith.addf %40, %37 : vector<2x128xf32>
    %42 = arith.maximumf %12, %14 : vector<2x128xf32>
    %43 = arith.maximumf %42, %16 : vector<2x128xf32>
    %44 = arith.minimumf %12, %14 : vector<2x128xf32>
    %45 = arith.minimumf %44, %16 : vector<2x128xf32>
    %46 = arith.subf %43, %45 : vector<2x128xf32>
    %cst_29 = arith.constant 1.000000e-10 : f32
    %47 = vector.broadcast %cst_29 : f32 to vector<2x128xf32>
    %48 = arith.addf %46, %47 : vector<2x128xf32>
    %49 = arith.cmpf ole, %12, %14 : vector<2x128xf32>
    %50 = arith.cmpf ole, %12, %16 : vector<2x128xf32>
    %51 = arith.andi %49, %50 : vector<2x128xi1>
    %52 = arith.cmpf ole, %14, %16 : vector<2x128xf32>
    %53 = arith.subf %16, %14 : vector<2x128xf32>
    %54 = arith.subf %12, %16 : vector<2x128xf32>
    %55 = arith.subf %14, %12 : vector<2x128xf32>
    %56 = arith.select %52, %54, %55 : vector<2x128xi1>, vector<2x128xf32>
    %57 = arith.select %51, %53, %56 : vector<2x128xi1>, vector<2x128xf32>
    %cst_30 = arith.constant 3.000000e+02 : f32
    %cst_31 = arith.constant 6.000000e+01 : f32
    %58 = vector.broadcast %cst_30 : f32 to vector<2x128xf32>
    %59 = vector.broadcast %cst_31 : f32 to vector<2x128xf32>
    %60 = arith.select %52, %58, %59 : vector<2x128xi1>, vector<2x128xf32>
    %cst_32 = arith.constant 1.800000e+02 : f32
    %61 = vector.broadcast %cst_32 : f32 to vector<2x128xf32>
    %62 = arith.select %51, %61, %60 : vector<2x128xi1>, vector<2x128xf32>
    %cst_33 = arith.constant 6.000000e+01 : f32
    %63 = vector.broadcast %cst_33 : f32 to vector<2x128xf32>
    %64 = arith.mulf %63, %57 : vector<2x128xf32>
    %65 = arith.divf %64, %48 : vector<2x128xf32>
    %66 = arith.addf %65, %62 : vector<2x128xf32>
    %67 = arith.subf %41, %66 : vector<2x128xf32>
    %68 = math.absf %67 : vector<2x128xf32>
    %cst_34 = arith.constant 1.800000e+02 : f32
    %69 = vector.broadcast %cst_34 : f32 to vector<2x128xf32>
    %70 = arith.subf %69, %68 : vector<2x128xf32>
    %71 = math.absf %70 : vector<2x128xf32>
    %cst_35 = arith.constant 1.800000e+02 : f32
    %72 = vector.broadcast %cst_35 : f32 to vector<2x128xf32>
    %73 = arith.subf %72, %71 : vector<2x128xf32>
    %74 = arith.addf %4, %73 : vector<2x128xf32>
    %c0_36 = arith.constant 0 : index
    %c0_37 = arith.constant 0 : index
    %c0_38 = arith.constant 0 : index
    %75 = vector.load %arg4[%c0_36, %c0_37, %c0_38] : memref<1x8x128xf32, #tpu.memory_space<vmem>>, vector<1x2x128xf32>
    %76 = vector.shape_cast %75 : vector<1x2x128xf32> to vector<2x128xf32>
    %77 = vector.shape_cast %74 : vector<2x128xf32> to vector<1x2x128xf32>
    tpu.vector_store %arg4[%c0_36, %c0_37, %c0_38], %77 {strides = array<i32>} : memref<1x8x128xf32, #tpu.memory_space<vmem>>, vector<1x2x128xf32>,
    return
  }
  func.func @transform_0(%arg0: i32, %arg1: i32) -> (i32, i32, i32, i32) {
    %c0_i32 = arith.constant 0 : i32
    %c0_i32_0 = arith.constant 0 : i32
    %c0_i32_1 = arith.constant 0 : i32
    return %arg0, %c0_i32, %arg1, %c0_i32_0 : i32, i32, i32, i32
  }
  func.func @transform_1(%arg0: i32, %arg1: i32) -> (i32, i32, i32, i32) {
    %c0_i32 = arith.constant 0 : i32
    %c0_i32_0 = arith.constant 0 : i32
    %c0_i32_1 = arith.constant 0 : i32
    return %arg0, %c0_i32, %arg1, %c0_i32_0 : i32, i32, i32, i32
  }
  func.func @transform_2(%arg0: i32, %arg1: i32) -> (i32, i32, i32) {
    %c0_i32 = arith.constant 0 : i32
    %c0_i32_0 = arith.constant 0 : i32
    %c0_i32_1 = arith.constant 0 : i32
    return %arg0, %c0_i32, %c0_i32_0 : i32, i32, i32
  }
}

</mosaic_0001>

<llo_original>
// kernel: hue_loss.1
$region0: #{hue_loss.1}
  #allocation0 [shape = 'u32[]', space=smem, size = 0x4, offset = 0x4, fixed_abs, tag = 'smem constant byte address 0x4 - core index']
  #allocation1 [shape = 'u32[144,128]{1,0:T(1,128)}', space=vmem, size = 0x12000, scoped, tag = 'internal scratch']
  %s0 = inlined_call_operand.vmem [shape: f32[2,3,2,128], index: 0, kind: input, shape index: {}]
  %s1 = inlined_call_operand.vmem [shape: f32[2,3,2,128], index: 1, kind: input, shape index: {}]
  %s2 = inlined_call_operand.vmem [shape: f32[2,8,128], index: 2, kind: output, shape index: {}]
  %s3 = sld [smem:[#allocation0]]
  $region45: #{hue_loss.1} parent=0
    _
  %s5 = ssub.s32 1, %s3
  %s6 = scalar_select 0, %s5, %s3
  loop: start=0, step=1, limit=4
  $region2: #{hue_loss.1} parent=0 // loop_pre_header
    _
  $region3: #{hue_loss.1} parent=0 // loop_header
    %s8 = sphi 0, %s12
    %p9 = scmp.ge.s32.totalorder %s8, 4
    %s15 = sphi 0, %s27
    %s16 = sphi 0, %s23
    %s17 = sphi 0, %s15
    %s18 = sphi 0, %s16
    %s19 = sphi 0, %s17
    %s20 = sphi 0, %s18
    %s32 = sphi 0, %s34
    %s35 = sphi 0, %s32
    %s36 = sphi 0, %s35
    %s52 = sphi 0, %s36
    %s60 = sphi 0, %s62
    %s63 = sphi 0, %s60
    %s64 = sphi 0, %s63
    %s80 = sphi 0, %s64
    %s86 = sphi 0, %s88
    %s89 = sphi 0, %s86
    %s90 = sphi 0, %s89
    %s106 = sphi 0, %s90
  $region4: #{hue_loss.1} parent=0 // loop_header_branch
    %11 = sbr.rel (%p9) target = $region8
  $region5: #{hue_loss.1} parent=0 // loop_body
    %s13 = ssub.s32 %s8, 1
    %s14 = ssub.s32 %s8, 2
    %s21 = sadd.s32 1, %s16
    %p22 = scmp.ge.s32.totalorder %s21, 1
    %s23 = scalar_select %p22, 0, %s21
    %s24 = sadd.s32 1, %s15
    %s25 = scalar_select %p22, %s24, %s15
    %p26 = scmp.ge.s32.totalorder %s25, 2
    %s27 = scalar_select %p26, 0, %s25
    %s28 = ssub.s32 %s15, %s27
    %s29 = ssub.s32 %s16, %s23
    %s30 = sor.u32 %s28, %s29
    %p31 = scmp.eq.s32.totalorder %s30, 0
    %s33 = sadd.s32 %s32, 1
    %s34 = scalar_select %p31, %s32, %s33
    %p37 = pneg %p31
    %p38 = scmp.eq.s32.totalorder %s8, 1
    %p39 = por %p37, %p38
    %p40 = scmp.ne.s32.totalorder %s32, %s35
    %p41 = scmp.eq.s32.totalorder %s8, 0
    %p42 = por %p40, %p41
    %p43 = scmp.ne.s32.totalorder %s32, %s35
    %p44 = scmp.eq.s32.totalorder %s13, 1
    %p45 = por %p43, %p44
    %p46 = scmp.ne.s32.totalorder %s35, %s36
    %p47 = scmp.eq.s32.totalorder %s13, 0
    %p48 = por %p46, %p47
    %p49 = scmp.ne.s32.totalorder %s35, %s36
    %p50 = scmp.eq.s32.totalorder %s14, 1
    %p51 = por %p49, %p50
    %p53 = scmp.ne.s32.totalorder %s36, %s52
    %p54 = scmp.eq.s32.totalorder %s14, 0
    %p55 = por %p53, %p54
    %s56 = ssub.s32 %s15, %s27
    %s57 = ssub.s32 %s16, %s23
    %s58 = sor.u32 %s56, %s57
    %p59 = scmp.eq.s32.totalorder %s58, 0
    %s61 = sadd.s32 %s60, 1
    %s62 = scalar_select %p59, %s60, %s61
    %p65 = pneg %p59
    %p66 = scmp.eq.s32.totalorder %s8, 1
    %p67 = por %p65, %p66
    %p68 = scmp.ne.s32.totalorder %s60, %s63
    %p69 = scmp.eq.s32.totalorder %s8, 0
    %p70 = por %p68, %p69
    %p71 = scmp.ne.s32.totalorder %s60, %s63
    %p72 = scmp.eq.s32.totalorder %s13, 1
    %p73 = por %p71, %p72
    %p74 = scmp.ne.s32.totalorder %s63, %s64
    %p75 = scmp.eq.s32.totalorder %s13, 0
    %p76 = por %p74, %p75
    %p77 = scmp.ne.s32.totalorder %s63, %s64
    %p78 = scmp.eq.s32.totalorder %s14, 1
    %p79 = por %p77, %p78
    %p81 = scmp.ne.s32.totalorder %s64, %s80
    %p82 = scmp.eq.s32.totalorder %s14, 0
    %p83 = por %p81, %p82
    %s84 = ssub.s32 %s15, %s27
    %p85 = scmp.eq.s32.totalorder %s84, 0
    %s87 = sadd.s32 %s86, 1
    %s88 = scalar_select %p85, %s86, %s87
    %p91 = pneg %p85
    %p92 = scmp.eq.s32.totalorder %s8, 1
    %p93 = por %p91, %p92
    %p94 = scmp.ne.s32.totalorder %s86, %s89
    %p95 = scmp.eq.s32.totalorder %s8, 0
    %p96 = por %p94, %p95
    %p97 = scmp.ne.s32.totalorder %s86, %s89
    %p98 = scmp.eq.s32.totalorder %s13, 1
    %p99 = por %p97, %p98
    %p100 = scmp.ne.s32.totalorder %s89, %s90
    %p101 = scmp.eq.s32.totalorder %s13, 0
    %p102 = por %p100, %p101
    %p103 = scmp.ne.s32.totalorder %s89, %s90
    %p104 = scmp.eq.s32.totalorder %s14, 1
    %p105 = por %p103, %p104
    %p107 = scmp.ne.s32.totalorder %s90, %s106
    %p108 = scmp.eq.s32.totalorder %s14, 0
    %p109 = por %p107, %p108
    %p110 = scmp.le.s32.totalorder 1, %s8
    %p111 = scmp.lt.s32.totalorder %s8, 3
    %p112 = pnand %p110, %p111
    %p113 = pneg %p112
    // Predicated region
    $region9: #{hue_loss.1} parent=5 // pred_check
      _
    $region10: #{hue_loss.1} parent=5 // pred_check_branch
      %115 = sbr.rel (%p112) target = $region12
    $region11: #{hue_loss.1} parent=5 // pred_region
      %s116 = ssub.s32 %s8, 1
    $region12: #{hue_loss.1} parent=5 // pred_fallthru
      _
    %p117 = scmp.lt.s32.totalorder %s8, 2
    // Predicated region
    $region13: #{hue_loss.1} parent=5 // pred_check
      %p118 = pneg %p117
    $region14: #{hue_loss.1} parent=5 // pred_check_branch
      %120 = sbr.rel (%p118) target = $region16
    $region15: #{hue_loss.1} parent=5 // pred_region
      // Predicated region
      $region17: #{hue_loss.1} parent=15 // pred_check
        %p121 = pneg %p42
      $region18: #{hue_loss.1} parent=15 // pred_check_branch
        %123 = sbr.rel (%p121) target = $region20
      $region19: #{hue_loss.1} parent=15 // pred_region
        %p124 = scmp.lt.s32.totalorder %s15, 1
        %s125 = scalar_select %p124, %s15, 1
        %p126 = scmp.lt.s32.totalorder %s16, 0
        %s127 = scalar_select %p126, %s16, 0
        %s128 = smul.addr %s125, 3
        %s129 = sadd.s32 %s127, %s128
        %s130 = smul.addr %s129, 2
        %s131 = scalar_lea.vmem %s0, %s130
      $region20: #{hue_loss.1} parent=15 // pred_fallthru
        _
      // Predicated region
      $region21: #{hue_loss.1} parent=15 // pred_check
        %p132 = pneg %p70
      $region22: #{hue_loss.1} parent=15 // pred_check_branch
        %134 = sbr.rel (%p132) target = $region24
      $region23: #{hue_loss.1} parent=15 // pred_region
        %p135 = scmp.lt.s32.totalorder %s15, 1
        %s136 = scalar_select %p135, %s15, 1
        %p137 = scmp.lt.s32.totalorder %s16, 0
        %s138 = scalar_select %p137, %s16, 0
        %s139 = smul.addr %s136, 3
        %s140 = sadd.s32 %s138, %s139
        %s141 = smul.addr %s140, 2
        %s142 = scalar_lea.vmem %s1, %s141
      $region24: #{hue_loss.1} parent=15 // pred_fallthru
        _
    $region16: #{hue_loss.1} parent=5 // pred_fallthru
      _
    %p143 = scmp.le.s32.totalorder 1, %s8
    %p144 = scmp.lt.s32.totalorder %s8, 3
    %p145 = pnand %p143, %p144
    %p146 = pneg %p145
    // Predicated region
    $region25: #{hue_loss.1} parent=5 // pred_check
      _
    $region26: #{hue_loss.1} parent=5 // pred_check_branch
      %148 = sbr.rel (%p145) target = $region28
    $region27: #{hue_loss.1} parent=5 // pred_region
      %s149 = ssub.s32 %s8, 1
      %p150 = scmp.lt.s32.totalorder %s17, 1
      %s151 = scalar_select %p150, %s17, 1
      %p152 = scmp.lt.s32.totalorder %s18, 0
      %s153 = scalar_select %p152, %s18, 0
      %s154 = smul.addr %s151, 3
      %s155 = sadd.s32 %s153, %s154
      %s156 = smul.addr %s155, 2
      %s157 = scalar_lea.vmem %s0, %s156
      %p158 = pneg %p48
      %p159 = pneg %p45
      %p160 = scmp.lt.s32.totalorder %s17, 1
      %s161 = scalar_select %p160, %s17, 1
      %p162 = scmp.lt.s32.totalorder %s18, 0
      %s163 = scalar_select %p162, %s18, 0
      %s164 = smul.addr %s161, 3
      %s165 = sadd.s32 %s163, %s164
      %s166 = smul.addr %s165, 2
      %s167 = scalar_lea.vmem %s1, %s166
      %p168 = pneg %p76
      %p169 = pneg %p73
      %p170 = pneg %p102
      %p171 = pneg %p99
      %p172 = scmp.lt.s32.totalorder %s17, 1
      %s173 = scalar_select %p172, %s17, 1
      %s174 = smul.addr %s173, 8
      %s175 = scalar_lea.vmem %s2, %s174
      %p176 = scmp.lt.s32.totalorder %s17, 1
      %s177 = scalar_select %p176, %s17, 1
      %p178 = scmp.lt.s32.totalorder %s18, 0
      %s179 = scalar_select %p178, %s18, 0
      %s180 = smul.addr %s177, 3
      %s181 = sadd.s32 %s179, %s180
      %s182 = smul.addr %s181, 2
      %s183 = scalar_lea.vmem %s0, %s182
      %p184 = scmp.lt.s32.totalorder %s17, 1
      %s185 = scalar_select %p184, %s17, 1
      %p186 = scmp.lt.s32.totalorder %s18, 0
      %s187 = scalar_select %p186, %s18, 0
      %s188 = smul.addr %s185, 3
      %s189 = sadd.s32 %s187, %s188
      %s190 = smul.addr %s189, 2
      %s191 = scalar_lea.vmem %s1, %s190
      %p192 = scmp.lt.s32.totalorder %s17, 1
      %s193 = scalar_select %p192, %s17, 1
      %s194 = smul.addr %s193, 8
      %s195 = scalar_lea.vmem %s2, %s194
      %p196 = scmp.eq.s32.totalorder %s18, 0
      // Predicated region
      $region29: #{hue_loss.1} parent=27 // pred_check
        %p197 = pneg %p196
      $region30: #{hue_loss.1} parent=27 // pred_check_branch
        %199 = sbr.rel (%p197) target = $region32
      $region31: #{hue_loss.1} parent=27 // pred_region
        %200 = vst [vmem:[%s195] sm:$0xff] 0.0
      $region32: #{hue_loss.1} parent=27 // pred_fallthru
        _
      %v201 = vld [vmem:[%s195] sm:$0x3]
      %v202 = vld [vmem:[%s183] sm:$0x3]
      %s203 = scalar_lea.vmem %s183, 2
      %v204 = vld [vmem:[%s203] sm:$0x3]
      %s205 = scalar_lea.vmem %s183, 4
      %v206 = vld [vmem:[%s205] sm:$0x3]
      %v207 = vld [vmem:[%s191] sm:$0x3]
      %s208 = scalar_lea.vmem %s191, 2
      %v209 = vld [vmem:[%s208] sm:$0x3]
      %s210 = scalar_lea.vmem %s191, 4
      %v211 = vld [vmem:[%s210] sm:$0x3]
      %v212 = vmax.f32 %v202, %v204
      %v213 = vmax.f32 %v212, %v206
      %v214 = vmin.f32 %v202, %v204
      %v215 = vmin.f32 %v214, %v206
      %v216 = vsub.f32 %v213, %v215
      %v217 = vadd.f32 %v216, 1e-10
      %vm218 = vcmp.le.f32.partialorder %v202, %v204
      %vm219 = vcmp.le.f32.partialorder %v202, %v206
      %vm220 = vmand %vm218, %vm219
      %vm221 = vcmp.le.f32.partialorder %v204, %v206
      %v222 = vsub.f32 %v206, %v204
      %v223 = vsub.f32 %v202, %v206
      %v224 = vsub.f32 %v204, %v202
      %v225 = vsel %vm221, %v223, %v224
      %v226 = vsel %vm220, %v222, %v225
      %v227 = vsel %vm221, 300.0, 60.0
      %v228 = vsel %vm220, 180.0, %v227
      %v229 = vmul.f32 %v226, 60.0
      %v230 = vrcp.pop %v217
      %v231 = vmul.f32 %v229, %v230
      %v232 = vadd.f32 %v231, %v228
      %v233 = vmax.f32 %v207, %v209
      %v234 = vmax.f32 %v233, %v211
      %v235 = vmin.f32 %v207, %v209
      %v236 = vmin.f32 %v235, %v211
      %v237 = vsub.f32 %v234, %v236
      %v238 = vadd.f32 %v237, 1e-10
      %vm239 = vcmp.le.f32.partialorder %v207, %v209
      %vm240 = vcmp.le.f32.partialorder %v207, %v211
      %vm241 = vmand %vm239, %vm240
      %vm242 = vcmp.le.f32.partialorder %v209, %v211
      %v243 = vsub.f32 %v211, %v209
      %v244 = vsub.f32 %v207, %v211
      %v245 = vsub.f32 %v209, %v207
      %v246 = vsel %vm242, %v244, %v245
      %v247 = vsel %vm241, %v243, %v246
      %v248 = vsel %vm242, 300.0, 60.0
      %v249 = vsel %vm241, 180.0, %v248
      %v250 = vmul.f32 %v247, 60.0
      %v251 = vrcp.pop %v238
      %v252 = vmul.f32 %v250, %v251
      %v253 = vadd.f32 %v252, %v249
      %v254 = vsub.f32 %v232, %v253
      %v255 = vand.u32 2147483647, %v254
      %v256 = vsub.f32 180.0, %v255
      %v257 = vand.u32 2147483647, %v256
      %v258 = vsub.f32 180.0, %v257
      %v259 = vadd.f32 %v201, %v258
      %260 = vst [vmem:[%s195] sm:$0x3] %v259
      %p261 = scmp.lt.s32.totalorder %s17, 1
      %s262 = scalar_select %p261, %s17, 1
      %s263 = smul.addr %s262, 8
      %s264 = scalar_lea.vmem %s2, %s263
      // Predicated region
      $region33: #{hue_loss.1} parent=27 // pred_check
        %p265 = pneg %p99
      $region34: #{hue_loss.1} parent=27 // pred_check_branch
        %267 = sbr.rel (%p265) target = $region36
      $region35: #{hue_loss.1} parent=27 // pred_region
        _
      $region36: #{hue_loss.1} parent=27 // pred_fallthru
        _
    $region28: #{hue_loss.1} parent=5 // pred_fallthru
      _
    %p268 = scmp.le.s32.totalorder 2, %s8
    // Predicated region
    $region37: #{hue_loss.1} parent=5 // pred_check
      %p269 = pneg %p268
    $region38: #{hue_loss.1} parent=5 // pred_check_branch
      %271 = sbr.rel (%p269) target = $region40
    $region39: #{hue_loss.1} parent=5 // pred_region
      %s272 = ssub.s32 %s8, 2
      // Predicated region
      $region41: #{hue_loss.1} parent=39 // pred_check
        %p273 = pneg %p105
      $region42: #{hue_loss.1} parent=39 // pred_check_branch
        %275 = sbr.rel (%p273) target = $region44
      $region43: #{hue_loss.1} parent=39 // pred_region
        %p276 = scmp.lt.s32.totalorder %s19, 1
        %s277 = scalar_select %p276, %s19, 1
        %s278 = smul.addr %s277, 8
        %s279 = scalar_lea.vmem %s2, %s278
      $region44: #{hue_loss.1} parent=39 // pred_fallthru
        _
    $region40: #{hue_loss.1} parent=5 // pred_fallthru
      _
  $region6: #{hue_loss.1} parent=0 // loop_footer
    %s12 = sadd.s32 1, %s8
  $region7: #{hue_loss.1} parent=0 // loop_footer_branch
    %7 = sbr.rel target = $region3
  $region8: #{hue_loss.1} parent=0 // loop_exit
    _

</llo_original>
